<compile_context>
chip_gen: v5e
topology: v5e:2x2
jax: 0.10.0
libtpu: 0.0.40
codegen_flags: <defaults>
</compile_context>

<pallas_src>
import functools

import jax
import jax.numpy as jnp
import numpy as np
from jax.experimental import pallas as pl
from jax.experimental.pallas import tpu as pltpu


# ---------------------------------------------------------------------------
# helpers
# ---------------------------------------------------------------------------
def _round_up(x: int, m: int) -> int:
    return ((x + m - 1) // m) * m


def _sublane(itemsize: int) -> int:
    # packed sublane count per vreg row for the given element size
    return {4: 8, 2: 16, 1: 32}.get(itemsize, 8)


def _largest_aligned_divisor(total: int, align: int, cap: int) -> int:
    """Largest multiple of `align` that divides `total` and is <= cap (0 if none)."""
    best = 0
    d = align
    limit = min(total, cap)
    while d <= limit:
        if total % d == 0:
            best = d
        d += align
    return best


def _vmem_budget_bytes() -> int:
    """Conservative per-core VMEM budget for this kernel's tiles."""
    try:
        phys = int(pltpu.get_tpu_info().vmem_capacity_bytes)
    except Exception:  # pragma: no cover - fallback if info query unavailable
        phys = 64 * 1024 * 1024  # assume the smallest generation (v7x per-TC)
    # leave slack for compiler-internal scratch; never ask for more than 48 MiB
    return int(min(0.6 * phys, 48 * 1024 * 1024))


def _vmem_footprint(tm, tn, tk, in_itemsize, out_itemsize) -> int:
    acc_bytes = 0 if out_itemsize == 4 else tm * tn * 4  # f32 scratch only for narrow outs
    return (
        2 * (tm * tk + tk * tn + tn) * in_itemsize  # double-buffered x, w, bias
        + 2 * tm * tn * out_itemsize                # double-buffered output
        + acc_bytes
    )


def _choose_nk_tiles(K, N, in_itemsize, out_itemsize, budget, tm_assumed=512):
    """Pick lane-aligned (tn, tk) that fit the VMEM budget for any tm <= tm_assumed."""
    Kr = _round_up(K, 128)
    Nr = _round_up(N, 128)
    tn_cap = min(1024, Nr)
    tk_cap = min(2048, Kr)

    def pick(total, cap):
        d = _largest_aligned_divisor(total, 128, cap)
        return d if d > 0 else min(cap, total)

    tn = pick(Nr, tn_cap)  # prefer divisors of the 128-rounded dim -> minimal padding
    tk = pick(Kr, tk_cap)

    usable = budget - (2 << 20)  # headroom for compiler-internal scratch
    while _vmem_footprint(tm_assumed, tn, tk, in_itemsize, out_itemsize) > usable:
        if tk >= tn and tk > 128:
            tk = _round_up(max(128, tk // 2), 128)
        elif tn > 128:
            tn = _round_up(max(128, tn // 2), 128)
        else:
            break
    return tn, tk


# ---------------------------------------------------------------------------
# kernels
# ---------------------------------------------------------------------------
def _linear_kernel_f32_out(x_ref, w_ref, b_ref, o_ref):
    """f32 output: accumulate directly into the resident output block."""
    k = pl.program_id(2)

    @pl.when(k == 0)
    def _():
        # init with the broadcast bias; the k-loop then just accumulates
        o_ref[...] = jnp.broadcast_to(b_ref[...], o_ref.shape)

    o_ref[...] += jnp.dot(x_ref[...], w_ref[...], preferred_element_type=jnp.float32)


def _linear_kernel_acc(x_ref, w_ref, b_ref, o_ref, acc_ref):
    """Narrow output dtype: accumulate in f32 scratch, cast in the epilogue."""
    k = pl.program_id(2)

    @pl.when(k == 0)
    def _():
        acc_ref[...] = jnp.broadcast_to(b_ref[...].astype(jnp.float32), acc_ref.shape)

    acc_ref[...] += jnp.dot(x_ref[...], w_ref[...], preferred_element_type=jnp.float32)

    @pl.when(k == pl.num_programs(2) - 1)
    def _():
        o_ref[...] = acc_ref[...].astype(o_ref.dtype)


def _tiled_linear(x_p, w_p, b_p, tm, tn, tk, out_dtype, vmem_limit):
    Mp, Kp = x_p.shape
    _, Np = w_p.shape
    grid = (Mp // tm, Np // tn, Kp // tk)

    f32_out = jnp.dtype(out_dtype) == jnp.dtype(jnp.float32)
    kernel = _linear_kernel_f32_out if f32_out else _linear_kernel_acc
    scratch = [] if f32_out else [pltpu.VMEM((tm, tn), jnp.float32)]

    return pl.pallas_call(
        kernel,
        out_shape=jax.ShapeDtypeStruct((Mp, Np), out_dtype),
        grid_spec=pltpu.PrefetchScalarGridSpec(
            num_scalar_prefetch=0,
            grid=grid,
            in_specs=[
                pl.BlockSpec((tm, tk), lambda i, j, k: (i, k)),
                pl.BlockSpec((tk, tn), lambda i, j, k: (k, j)),
                pl.BlockSpec((1, tn), lambda i, j, k: (0, j)),
            ],
            out_specs=pl.BlockSpec((tm, tn), lambda i, j, k: (i, j)),
            scratch_shapes=scratch,
        ),
        compiler_params=pltpu.CompilerParams(
            dimension_semantics=("parallel", "parallel", "arbitrary"),
            vmem_limit_bytes=int(vmem_limit),
        ),
    )(x_p, w_p, b_p)


# ---------------------------------------------------------------------------
# module-level wrapper:  y = x @ w + bias
# ---------------------------------------------------------------------------
def make_linear(w, bias):
    """Build a jitted forward for the linear layer.

    The weight / bias are padded to tile boundaries exactly once here (outside
    the jitted forward), so each call only (possibly) pads x's small remainder.
    """
    K, N = w.shape
    in_dtype = jnp.dtype(w.dtype)
    out_dtype = in_dtype  # torch.mm keeps the input dtype
    in_itemsize = in_dtype.itemsize
    out_itemsize = out_dtype.itemsize
    sub = _sublane(in_itemsize)

    budget = _vmem_budget_bytes()
    tn, tk = _choose_nk_tiles(K, N, in_itemsize, out_itemsize, budget, tm_assumed=512)
    Kp = _round_up(K, tk)
    Np = _round_up(N, tn)

    # one-time parameter padding (zeros in the extra K rows contribute 0)
    w_p = w if (Kp == K and Np == N) else jnp.pad(w, ((0, Kp - K), (0, Np - N)))
    b_p = (bias if Np == N else jnp.pad(bias, (0, Np - N))).reshape(1, Np)
    w_p = jax.device_put(w_p)
    b_p = jax.device_put(b_p)

    @functools.partial(jax.jit, static_argnames=("training",))
    def _fwd(x, w_pad, b_pad, training=True):
        M, Kx = x.shape
        assert Kx == K, "input_dim mismatch"

        tm = min(512, _round_up(M, sub))
        Mp = _round_up(M, tm)
        # Keep >= 2 output tiles when the problem is big enough so the two
        # "parallel" grid axes can actually shard across 2 TensorCores (v7x).
        if (Mp // tm) * (Np // tn) < 2 and M >= 128:
            tm = _round_up((M + 1) // 2, sub)
            Mp = 2 * tm

        x_p = x if (Mp == M and Kp == K) else jnp.pad(x, ((0, Mp - M), (0, Kp - K)))

        vmem_limit = min(
            max(_vmem_footprint(tm, tn, tk, in_itemsize, out_itemsize) + (2 << 20),
                4 * 1024 * 1024),
            budget,
        )

        out_p = _tiled_linear(x_p, w_pad, b_pad, tm, tn, tk, out_dtype, vmem_limit)
        if Mp == M and Np == N:
            return out_p
        return out_p[:M, :N]

    def forward(x, training=True):
        # training flag kept for API parity with the PyTorch module (same math)
        return _fwd(x, w_p, b_p, training=training)

    return forward


def init_params(input_dim, output_dim, key):
    """Deterministic init mirroring the PyTorch module's uniform(-scale, scale)."""
    scale = 1.0 * np.sqrt(6.0 / (input_dim + output_dim))
    kw, kb = jax.random.split(key)
    w = jax.random.uniform(
        kw, (input_dim, output_dim), dtype=jnp.float32, minval=-scale, maxval=scale
    )
    bias = jax.random.uniform(
        kb, (output_dim,), dtype=jnp.float32, minval=-scale, maxval=scale
    )
    return w, bias


if __name__ == "__main__":
    key = jax.random.PRNGKey(0)
    k_x, k_p = jax.random.split(key)

    # Small shapes consistent with the module's forward (x: [batch, input_dim]).
    batch, input_dim, output_dim = 8, 32, 16
    x = jax.random.normal(k_x, (batch, input_dim), dtype=jnp.float32)
    w, bias = init_params(input_dim, output_dim, k_p)

    linear = make_linear(w, bias)
    y = linear(x, training=True)
    jax.block_until_ready(y)

    y_ref = x @ w + bias
    assert y.shape == (batch, output_dim)
    np.testing.assert_allclose(np.asarray(y), np.asarray(y_ref), rtol=1e-5, atol=1e-5)

    # larger, multi-tile case exercising the 3-D grid / megacore split path
    M2, K2, N2 = 512, 384, 320
    x2 = jax.random.normal(jax.random.PRNGKey(1), (M2, K2), dtype=jnp.float32)
    w2, b2 = init_params(K2, N2, jax.random.PRNGKey(2))
    linear2 = make_linear(w2, b2)
    y2 = linear2(x2, training=False)
    jax.block_until_ready(y2)
    np.testing.assert_allclose(
        np.asarray(y2), np.asarray(x2 @ w2 + b2), rtol=1e-4, atol=1e-4
    )

    print("KERNEL_OK")
</pallas_src>

<mosaic_0001>
module attributes {stable_mosaic.version = 11 : i64} {
  func.func @_linear_kernel_f32_out(%arg0: i32, %arg1: i32, %arg2: i32, %arg3: memref<8x128xf32, #tpu.memory_space<vmem>>, %arg4: memref<128x128xf32, #tpu.memory_space<vmem>>, %arg5: memref<1x128xf32, #tpu.memory_space<vmem>>, %arg6: memref<8x128xf32, #tpu.memory_space<vmem>>) attributes {dimension_semantics = [#tpu.dimension_semantics<parallel>, #tpu.dimension_semantics<parallel>, #tpu.dimension_semantics<arbitrary>], iteration_bounds = array<i64: 1, 1, 1>, scalar_prefetch = 0 : i64, scratch_operands = 0 : i64, tpu.core_type = #tpu.core_type<tc>, window_params = [{transform_indices = @transform_0, window_bounds = array<i64: 8, 128>}, {transform_indices = @transform_1, window_bounds = array<i64: 128, 128>}, {transform_indices = @transform_2, window_bounds = array<i64: 1, 128>}, {transform_indices = @transform_3, window_bounds = array<i64: 8, 128>}]} {
    %c0_i32 = arith.constant 0 : i32
    %0 = arith.cmpi eq, %arg2, %c0_i32 : i32
    %1 = arith.extui %0 : i1 to i32
    %c0_i32_0 = arith.constant 0 : i32
    %2 = arith.cmpi ne, %1, %c0_i32_0 : i32
    scf.if %2 {
      %c0_8 = arith.constant 0 : index
      %c0_9 = arith.constant 0 : index
      %9 = vector.load %arg5[%c0_8, %c0_9] : memref<1x128xf32, #tpu.memory_space<vmem>>, vector<1x128xf32>
      %10 = vector.shape_cast %9 : vector<1x128xf32> to vector<1x128xf32>
      %11 = vector.broadcast %10 : vector<1x128xf32> to vector<8x128xf32>
      %c0_10 = arith.constant 0 : index
      %c0_11 = arith.constant 0 : index
      %12 = vector.load %arg6[%c0_10, %c0_11] : memref<8x128xf32, #tpu.memory_space<vmem>>, vector<8x128xf32>
      tpu.vector_store %arg6[%c0_10, %c0_11], %11 {strides = array<i32>} : memref<8x128xf32, #tpu.memory_space<vmem>>, vector<8x128xf32>,
    } else {
    }
    %c0 = arith.constant 0 : index
    %c0_1 = arith.constant 0 : index
    %3 = vector.load %arg6[%c0, %c0_1] : memref<8x128xf32, #tpu.memory_space<vmem>>, vector<8x128xf32>
    %c0_2 = arith.constant 0 : index
    %c0_3 = arith.constant 0 : index
    %4 = vector.load %arg3[%c0_2, %c0_3] : memref<8x128xf32, #tpu.memory_space<vmem>>, vector<8x128xf32>
    %c0_4 = arith.constant 0 : index
    %c0_5 = arith.constant 0 : index
    %5 = vector.load %arg4[%c0_4, %c0_5] : memref<128x128xf32, #tpu.memory_space<vmem>>, vector<128x128xf32>
    %cst = arith.constant dense<0.000000e+00> : vector<8x128xf32>
    %6 = tpu.matmul %4, %5, %cst {dimension_numbers = #tpu.dot_dimension_numbers<[1], [0], [0], [1], [0, 0, 1, 1], [], []>} : vector<8x128xf32>, vector<128x128xf32>, vector<8x128xf32> -> vector<8x128xf32>
    %7 = arith.addf %3, %6 : vector<8x128xf32>
    %c0_6 = arith.constant 0 : index
    %c0_7 = arith.constant 0 : index
    %8 = vector.load %arg6[%c0_6, %c0_7] : memref<8x128xf32, #tpu.memory_space<vmem>>, vector<8x128xf32>
    tpu.vector_store %arg6[%c0_6, %c0_7], %7 {strides = array<i32>} : memref<8x128xf32, #tpu.memory_space<vmem>>, vector<8x128xf32>,
    return
  }
  func.func @transform_0(%arg0: i32, %arg1: i32, %arg2: i32) -> (i32, i32) {
    %c0_i32 = arith.constant 0 : i32
    return %arg0, %arg2 : i32, i32
  }
  func.func @transform_1(%arg0: i32, %arg1: i32, %arg2: i32) -> (i32, i32) {
    %c0_i32 = arith.constant 0 : i32
    return %arg2, %arg1 : i32, i32
  }
  func.func @transform_2(%arg0: i32, %arg1: i32, %arg2: i32) -> (i32, i32) {
    %c0_i32 = arith.constant 0 : i32
    %c0_i32_0 = arith.constant 0 : i32
    return %c0_i32, %arg1 : i32, i32
  }
  func.func @transform_3(%arg0: i32, %arg1: i32, %arg2: i32) -> (i32, i32) {
    %c0_i32 = arith.constant 0 : i32
    return %arg0, %arg1 : i32, i32
  }
}

</mosaic_0001>

<llo_original>
// kernel: _fwd.1
$region0: #{_fwd.1}
  #allocation0 [shape = 'u32[]', space=smem, size = 0x4, offset = 0x4, fixed_abs, tag = 'smem constant byte address 0x4 - core index']
  #allocation1 [shape = 'u32[72,128]{1,0:T(1,128)}', space=vmem, size = 0x9000, scoped, tag = 'internal scratch']
  %s0 = inlined_call_operand.vmem [shape: f32[8,128], index: 0, kind: input, shape index: {}]
  %s1 = inlined_call_operand.hbm [shape: f32[128,128], index: 1, kind: input, shape index: {}]
  %s2 = inlined_call_operand.vmem [shape: f32[1,128], index: 2, kind: input, shape index: {}]
  %s3 = inlined_call_operand.hbm [shape: f32[8,128], index: 3, kind: output, shape index: {}]
  %s4 = sld [smem:[#allocation0]]
  $region30: #{_fwd.1} parent=0
    _
  %s6 = ssub.s32 1, %s4
  %s7 = scalar_select 0, %s6, %s4
  $region1: #{_fwd.1} parent=0
    #allocation2 [shape = 'u8[65536]{0}', space=vmem, size = 0x10000, scoped, tag = 'input window, operand 1, single buffered']
    #allocation3 [shape = 's32[1]{0}', space=sflag, size = 0x4, scoped, tag = 'scoped memory for _fwd.1']
    #allocation4 [shape = 's32[1]{0}', space=sflag, size = 0x4, scoped, tag = 'scoped memory for _fwd.1']
    #allocation5 [shape = 'u8[4096]{0}', space=vmem, size = 0x1000, scoped, tag = 'output window, operand 0, single buffered']
    %8 = vsyncpa [#allocation3], 0
    %9 = vsyncpa [#allocation4], 0
    // Predicated region
    $region2: #{_fwd.1} parent=1 // pred_check
      _
    $region3: #{_fwd.1} parent=1 // pred_check_branch
      %11 = sbr.rel (0) target = $region5
    $region4: #{_fwd.1} parent=1 // pred_region
      _
    $region5: #{_fwd.1} parent=1 // pred_fallthru
      _
    // Predicated region
    $region6: #{_fwd.1} parent=1 // pred_check
      _
    $region7: #{_fwd.1} parent=1 // pred_check_branch
      %13 = sbr.rel (0) target = $region9
    $region8: #{_fwd.1} parent=1 // pred_region
      %15 = vsyncadd [#allocation3], 0
      %s16 = sshll.u32 %s1, 4
      %s17 = int_to_ptr.hbm [resolvable:$true] %s16
      %s18 = sshll.u32 [#allocation2], 4
      %s19 = int_to_ptr.vmem [resolvable:$true] %s18
      %24 = dma.hbm_to_vmem [thread:$0]  %s17, 2048, %s19, [#allocation3], 128, 128, 8
    $region9: #{_fwd.1} parent=1 // pred_fallthru
      _
    // Predicated region
    $region10: #{_fwd.1} parent=1 // pred_check
      _
    $region11: #{_fwd.1} parent=1 // pred_check_branch
      %26 = sbr.rel (0) target = $region13
    $region12: #{_fwd.1} parent=1 // pred_region
      _
    $region13: #{_fwd.1} parent=1 // pred_fallthru
      _
    // Predicated region
    $region14: #{_fwd.1} parent=1 // pred_check
      _
    $region15: #{_fwd.1} parent=1 // pred_check_branch
      %28 = sbr.rel (0) target = $region17
    $region16: #{_fwd.1} parent=1 // pred_region
      %30 = dma.done [#allocation3], 2048
    $region17: #{_fwd.1} parent=1 // pred_fallthru
      _
    %p31 = scmp.eq.s32.totalorder 0, 0
    // Predicated region
    $region18: #{_fwd.1} parent=1 // pred_check
      %p32 = pneg %p31
    $region19: #{_fwd.1} parent=1 // pred_check_branch
      %34 = sbr.rel (%p32) target = $region21
    $region20: #{_fwd.1} parent=1 // pred_region
      %v35 = vld [vmem:[%s2] sm:$0x1]
      %v37 = vperm.slane %v35, 0
      %39 = vst [vmem:[#allocation5] sm:$0xff] %v37
    $region21: #{_fwd.1} parent=1 // pred_fallthru
      _
    %v40 = vld [vmem:[#allocation5] sm:$0xff]
    %v41 = vld [vmem:[%s0] sm:$0xff]
    %v42 = vld [vmem:[#allocation2] sm:$0xff]
    %v43 = vld [vmem:[#allocation2 + $0x8] sm:$0xff]
    %v44 = vld [vmem:[#allocation2 + $0x10] sm:$0xff]
    %v45 = vld [vmem:[#allocation2 + $0x18] sm:$0xff]
    %v46 = vld [vmem:[#allocation2 + $0x20] sm:$0xff]
    %v47 = vld [vmem:[#allocation2 + $0x28] sm:$0xff]
    %v48 = vld [vmem:[#allocation2 + $0x30] sm:$0xff]
    %v49 = vld [vmem:[#allocation2 + $0x38] sm:$0xff]
    %v50 = vld [vmem:[#allocation2 + $0x40] sm:$0xff]
    %v51 = vld [vmem:[#allocation2 + $0x48] sm:$0xff]
    %v52 = vld [vmem:[#allocation2 + $0x50] sm:$0xff]
    %v53 = vld [vmem:[#allocation2 + $0x58] sm:$0xff]
    %v54 = vld [vmem:[#allocation2 + $0x60] sm:$0xff]
    %v55 = vld [vmem:[#allocation2 + $0x68] sm:$0xff]
    %v56 = vld [vmem:[#allocation2 + $0x70] sm:$0xff]
    %v57 = vld [vmem:[#allocation2 + $0x78] sm:$0xff]
    %58 = vmatpush.msra.mxu0 %v57
    %59 = vmatpush.msra.mxu0 %v56
    %60 = vmatpush.msra.mxu0 %v55
    %61 = vmatpush.msra.mxu0 %v54
    %62 = vmatpush.msra.mxu0 %v53
    %63 = vmatpush.msra.mxu0 %v52
    %64 = vmatpush.msra.mxu0 %v51
    %65 = vmatpush.msra.mxu0 %v50
    %66 = vmatpush.msra.mxu0 %v49
    %67 = vmatpush.msra.mxu0 %v48
    %68 = vmatpush.msra.mxu0 %v47
    %69 = vmatpush.msra.mxu0 %v46
    %70 = vmatpush.msra.mxu0 %v45
    %71 = vmatpush.msra.mxu0 %v44
    %72 = vmatpush.msra.mxu0 %v43
    %73 = vmatpush.msra.mxu0 %v42
    %74 = vmatmul.f32.gmra.mxu0 %v41
    %v75 = vpop.f32.mrf.mxu0
    %v76 = vadd.f32 0.0, %v75
    %77 = vdwg.mxu0
    %v78 = vadd.f32 %v40, %v76
    %79 = vst [vmem:[#allocation5] sm:$0xff] %v78
    // Predicated region
    $region22: #{_fwd.1} parent=1 // pred_check
      _
    $region23: #{_fwd.1} parent=1 // pred_check_branch
      %81 = sbr.rel (0) target = $region25
    $region24: #{_fwd.1} parent=1 // pred_region
      %83 = vsyncadd [#allocation4], 0
      %s85 = sshll.u32 [#allocation5], 4
      %s86 = int_to_ptr.vmem [resolvable:$true] %s85
      %s87 = sshll.u32 %s3, 4
      %s88 = int_to_ptr.hbm [resolvable:$true] %s87
      %90 = dma.vmem_to_hbm [thread:$0]  %s86, 128, %s88, [#allocation4]
    $region25: #{_fwd.1} parent=1 // pred_fallthru
      _
    // Predicated region
    $region26: #{_fwd.1} parent=1 // pred_check
      _
    $region27: #{_fwd.1} parent=1 // pred_check_branch
      %92 = sbr.rel (0) target = $region29
    $region28: #{_fwd.1} parent=1 // pred_region
      %94 = dma.done [#allocation4], 128
    $region29: #{_fwd.1} parent=1 // pred_fallthru
      _
    %95 = vsyncpa [#allocation3], 1
    %96 = vsyncpa [#allocation4], 1

</llo_original>
